<compile_context>
chip_gen: v5e
topology: v5e:2x2
jax: 0.10.0
libtpu: 0.0.40
codegen_flags: <defaults>
</compile_context>

<pallas_src>
import jax
import jax.numpy as jnp
from jax.experimental import pallas as pl
from jax.experimental.pallas import tpu as pltpu

EPS = 1e-5  # PyTorch nn.LayerNorm default eps


def _relu(v):
    return jnp.maximum(v, 0.0)


def _default_tile_b(batch):
    """One big tile on single-TC chips (v5e/v6e); >=2 tiles on dual-TC v7x."""
    kind = ""
    try:
        kind = jax.devices()[0].device_kind.lower()
    except Exception:
        pass
    num_tc = 2 if "v7" in kind else 1
    bp = -(-batch // 128) * 128            # round batch up to lane multiple
    per_tc = -(-bp // num_tc)
    tile = -(-per_tc // 128) * 128
    return int(max(128, min(1024, tile)))  # cap: vreg spills past ~1024


def pack_params(params):
    """Pack per-layer (W(out,in), b(out,), gamma(out,), beta(out,)) into one
    lane-padded f32 slab so the kernel gets a single parameter DMA stream.

    Layer l occupies rows [off_l, off_l + out_l):
      cols [0, in_l)  = W
      col  in_l       = b
      col  in_l + 1   = gamma
      col  in_l + 2   = beta
    Returns (slab (R, C) f32, layout = [(row_off, d_in, d_out), ...]) with
    layout being static Python metadata.
    """
    blocks, layout = [], []
    off, max_cols = 0, 0
    for (w, b, g, be) in params:
        d_out, d_in = w.shape
        blk = jnp.concatenate(
            [w.astype(jnp.float32),
             b.reshape(d_out, 1).astype(jnp.float32),
             g.reshape(d_out, 1).astype(jnp.float32),
             be.reshape(d_out, 1).astype(jnp.float32)], axis=1)
        blocks.append(blk)
        layout.append((off, d_in, d_out))
        off += d_out
        max_cols = max(max_cols, d_in + 3)
    rows = -(-off // 8) * 8                 # sublane multiple
    cols = max(128, -(-max_cols // 128) * 128)  # lane multiple
    slab = jnp.zeros((rows, cols), jnp.float32)
    for blk, (row_off, d_in, d_out) in zip(blocks, layout):
        slab = slab.at[row_off:row_off + d_out, :d_in + 3].set(blk)
    return slab, layout


def universal_net_forward(x, slab, layout, acts=None, *, tile_b=None):
    """x: (B, D0).  slab/layout: from pack_params.  acts: list of callables."""
    B, D0 = x.shape
    n_layers = len(layout)
    if acts is None:
        acts = [_relu] * (n_layers - 1) + [jnp.tanh]
    assert len(acts) == n_layers
    assert D0 == layout[0][1], "input feature dim mismatch"
    d_out = layout[-1][2]

    if tile_b is None:
        tile_b = _default_tile_b(B)
    assert tile_b % 128 == 0, "tile_b must be a multiple of 128 (lane width)"
    n_tiles = pl.cdiv(B, tile_b)

    def kernel(x_ref, slab_ref, o_ref):
        # x block: (tile_b, D0) straight from HBM (no wrapper transpose/pad).
        xb = x_ref[...]
        if xb.dtype != jnp.float32:
            xb = xb.astype(jnp.float32)

        h = None
        for li, ((row_off, d_in, d_o), act) in enumerate(zip(layout, acts)):
            # Static VMEM views into the packed parameter slab (zero-cost slicing).
            w = slab_ref[row_off:row_off + d_o, 0:d_in]                # (d_o, d_in)
            b = slab_ref[row_off:row_off + d_o, d_in:d_in + 1]         # (d_o, 1)
            g = slab_ref[row_off:row_off + d_o, d_in + 1:d_in + 2]     # (d_o, 1)
            be = slab_ref[row_off:row_off + d_o, d_in + 2:d_in + 3]    # (d_o, 1)

            if li == 0:
                # Contract W's in-dim with x's last (feature) dim:
                # (d_o, d_in) x (tile_b, d_in) -> (d_o, tile_b).  Batch lands on lanes.
                h = jax.lax.dot_general(
                    w, xb, (((1,), (1,)), ((), ())),
                    preferred_element_type=jnp.float32)
            else:
                # (d_o, d_in) @ (d_in, tile_b) -> (d_o, tile_b)
                h = jnp.dot(w, h, preferred_element_type=jnp.float32)

            h = act(h + b)

            # LayerNorm over the feature (sublane) axis, centered two-pass
            # variance (matches PyTorch, no E[x^2]-mu^2 cancellation).
            inv_n = 1.0 / float(d_o)
            mu = jnp.sum(h, axis=0, keepdims=True) * inv_n       # (1, tile_b)
            d = h - mu
            var = jnp.sum(d * d, axis=0, keepdims=True) * inv_n  # (1, tile_b)
            h = d * jax.lax.rsqrt(var + EPS) * g + be            # rsqrt -> EUP

        o_ref[...] = h.astype(o_ref.dtype)   # (d_out, tile_b): lane-dense store

    in_specs = [
        pl.BlockSpec((tile_b, D0), lambda i: (i, 0)),      # x, natural layout
        pl.BlockSpec(slab.shape, lambda i: (0, 0)),        # param slab, resident
    ]
    out_spec = pl.BlockSpec((d_out, tile_b), lambda i: (0, i))

    # Advisory cost: kernel is launch/overhead bound; help XLA overlap neighbors.
    matmul_flops = 2 * B * sum(d_in * d_o for (_, d_in, d_o) in layout)
    ln_flops = 8 * B * sum(d_o for (_, _, d_o) in layout)
    cost = pl.CostEstimate(
        flops=int(matmul_flops + ln_flops),
        transcendentals=int(B * (d_out + n_layers)),       # tanh + per-layer rsqrt
        bytes_accessed=int(4 * B * (D0 + d_out) + 4 * slab.size),
    )

    out_t = pl.pallas_call(
        kernel,
        out_shape=jax.ShapeDtypeStruct((d_out, B), x.dtype),
        grid=(n_tiles,),
        in_specs=in_specs,
        out_specs=out_spec,
        compiler_params=pltpu.CompilerParams(dimension_semantics=("parallel",)),
        cost_estimate=cost,
    )(x, slab)

    # Module-facing (B, d_out) view; consumers that accept (d_out, B) should
    # use out_t directly to skip this (XLA-fusable) transpose.
    return out_t.T


def init_params(key, dims):
    """PyTorch-default-style init: U(-1/sqrt(fan_in), +1/sqrt(fan_in)).  W stored (out, in)."""
    params = []
    for i in range(len(dims) - 1):
        fan_in, fan_out = dims[i], dims[i + 1]
        key, k_w, k_b = jax.random.split(key, 3)
        bound = 1.0 / float(fan_in) ** 0.5
        w = jax.random.uniform(k_w, (fan_out, fan_in), jnp.float32, -bound, bound)
        b = jax.random.uniform(k_b, (fan_out,), jnp.float32, -bound, bound)
        gamma = jnp.ones((fan_out,), jnp.float32)    # LayerNorm weight
        beta = jnp.zeros((fan_out,), jnp.float32)    # LayerNorm bias
        params.append((w, b, gamma, beta))
    return params


def _reference_forward(x, params, acts):
    """Pure-JAX reference of the same forward pass (canonical PyTorch form)."""
    h = x
    for (w, b, g, be), act in zip(params, acts):
        h = act(h @ w.T + b[None, :])
        mu = jnp.mean(h, axis=-1, keepdims=True)
        var = jnp.mean((h - mu) ** 2, axis=-1, keepdims=True)
        h = (h - mu) * jax.lax.rsqrt(var + EPS) * g[None, :] + be[None, :]
    return h


if __name__ == "__main__":
    key = jax.random.PRNGKey(0)
    key, k_x = jax.random.split(key)

    dims = [16, 32, 32, 8]          # in -> hidden -> hidden -> out
    batch = 200                     # ragged batch: exercises partial-block handling
    acts = [_relu, _relu, jnp.tanh]

    x = jax.random.normal(k_x, (batch, dims[0]), dtype=jnp.float32)
    params = init_params(key, dims)
    slab, layout = pack_params(params)
    ref = _reference_forward(x, params, acts)

    # 1) explicit small tile: 1 full tile + 1 partial tile (multi-step grid path)
    out = jax.block_until_ready(universal_net_forward(x, slab, layout, acts, tile_b=128))
    assert out.shape == (batch, dims[-1])
    assert jnp.allclose(out, ref, atol=1e-4, rtol=1e-4), float(jnp.max(jnp.abs(out - ref)))

    # 2) generation-aware default tiling (single large tile on v5e/v6e, split on v7x)
    out2 = jax.block_until_ready(universal_net_forward(x, slab, layout, acts))
    assert jnp.allclose(out2, ref, atol=1e-4, rtol=1e-4), float(jnp.max(jnp.abs(out2 - ref)))

    print("KERNEL_OK")
</pallas_src>

<mosaic_0001>
module attributes {stable_mosaic.version = 11 : i64} {
  func.func @kernel(%arg0: i32, %arg1: memref<128x16xf32, #tpu.memory_space<vmem>>, %arg2: memref<72x128xf32, #tpu.memory_space<vmem>>, %arg3: memref<8x128xf32, #tpu.memory_space<vmem>>) attributes {dimension_semantics = [#tpu.dimension_semantics<parallel>], iteration_bounds = array<i64: 2>, scalar_prefetch = 0 : i64, scratch_operands = 0 : i64, tpu.core_type = #tpu.core_type<tc>, window_params = [{transform_indices = @transform_0, window_bounds = array<i64: 128, 16>}, {pipeline_mode = #tpu.pipeline_mode<synchronous>, transform_indices = @transform_1, window_bounds = array<i64: 72, 128>}, {transform_indices = @transform_2, window_bounds = array<i64: 8, 128>}]} {
    %c0 = arith.constant 0 : index
    %c0_0 = arith.constant 0 : index
    %0 = vector.load %arg1[%c0, %c0_0] : memref<128x16xf32, #tpu.memory_space<vmem>>, vector<128x16xf32>
    %c0_1 = arith.constant 0 : index
    %c0_2 = arith.constant 0 : index
    %1 = vector.load %arg2[%c0_1, %c0_2] : memref<72x128xf32, #tpu.memory_space<vmem>>, vector<32x16xf32>
    %c0_3 = arith.constant 0 : index
    %c16 = arith.constant 16 : index
    %2 = vector.load %arg2[%c0_3, %c16] : memref<72x128xf32, #tpu.memory_space<vmem>>, vector<32x1xf32>
    %c0_4 = arith.constant 0 : index
    %c17 = arith.constant 17 : index
    %3 = vector.load %arg2[%c0_4, %c17] : memref<72x128xf32, #tpu.memory_space<vmem>>, vector<32x1xf32>
    %c0_5 = arith.constant 0 : index
    %c18 = arith.constant 18 : index
    %4 = vector.load %arg2[%c0_5, %c18] : memref<72x128xf32, #tpu.memory_space<vmem>>, vector<32x1xf32>
    %cst = arith.constant dense<0.000000e+00> : vector<32x128xf32>
    %5 = tpu.matmul %1, %0, %cst {dimension_numbers = #tpu.dot_dimension_numbers<[1], [1], [0], [0], [0, 0, 1, 0], [], []>} : vector<32x16xf32>, vector<128x16xf32>, vector<32x128xf32> -> vector<32x128xf32>
    %6 = vector.broadcast %2 : vector<32x1xf32> to vector<32x128xf32>
    %7 = arith.addf %5, %6 : vector<32x128xf32>
    %cst_6 = arith.constant 0.000000e+00 : f32
    %8 = vector.broadcast %cst_6 : f32 to vector<32x128xf32>
    %9 = arith.maximumf %7, %8 : vector<32x128xf32>
    %cst_7 = arith.constant dense<0.000000e+00> : vector<128xf32>
    %10 = vector.multi_reduction <add>, %9, %cst_7 [0] : vector<32x128xf32> to vector<128xf32>
    %11 = vector.shape_cast %10 : vector<128xf32> to vector<1x128xf32>
    %cst_8 = arith.constant 3.125000e-02 : f32
    %12 = vector.broadcast %cst_8 : f32 to vector<1x128xf32>
    %13 = arith.mulf %11, %12 : vector<1x128xf32>
    %14 = vector.broadcast %13 : vector<1x128xf32> to vector<32x128xf32>
    %15 = arith.subf %9, %14 : vector<32x128xf32>
    %16 = arith.mulf %15, %15 : vector<32x128xf32>
    %cst_9 = arith.constant dense<0.000000e+00> : vector<128xf32>
    %17 = vector.multi_reduction <add>, %16, %cst_9 [0] : vector<32x128xf32> to vector<128xf32>
    %18 = vector.shape_cast %17 : vector<128xf32> to vector<1x128xf32>
    %cst_10 = arith.constant 3.125000e-02 : f32
    %19 = vector.broadcast %cst_10 : f32 to vector<1x128xf32>
    %20 = arith.mulf %18, %19 : vector<1x128xf32>
    %cst_11 = arith.constant 9.99999974E-6 : f32
    %21 = vector.broadcast %cst_11 : f32 to vector<1x128xf32>
    %22 = arith.addf %20, %21 : vector<1x128xf32>
    %23 = math.rsqrt %22 : vector<1x128xf32>
    %24 = vector.broadcast %23 : vector<1x128xf32> to vector<32x128xf32>
    %25 = arith.mulf %15, %24 : vector<32x128xf32>
    %26 = vector.broadcast %3 : vector<32x1xf32> to vector<32x128xf32>
    %27 = arith.mulf %25, %26 : vector<32x128xf32>
    %28 = vector.broadcast %4 : vector<32x1xf32> to vector<32x128xf32>
    %29 = arith.addf %27, %28 : vector<32x128xf32>
    %c32 = arith.constant 32 : index
    %c0_12 = arith.constant 0 : index
    %30 = vector.load %arg2[%c32, %c0_12] : memref<72x128xf32, #tpu.memory_space<vmem>>, vector<32x32xf32>
    %c32_13 = arith.constant 32 : index
    %c32_14 = arith.constant 32 : index
    %31 = vector.load %arg2[%c32_13, %c32_14] : memref<72x128xf32, #tpu.memory_space<vmem>>, vector<32x1xf32>
    %c32_15 = arith.constant 32 : index
    %c33 = arith.constant 33 : index
    %32 = vector.load %arg2[%c32_15, %c33] : memref<72x128xf32, #tpu.memory_space<vmem>>, vector<32x1xf32>
    %c32_16 = arith.constant 32 : index
    %c34 = arith.constant 34 : index
    %33 = vector.load %arg2[%c32_16, %c34] : memref<72x128xf32, #tpu.memory_space<vmem>>, vector<32x1xf32>
    %cst_17 = arith.constant dense<0.000000e+00> : vector<32x128xf32>
    %34 = tpu.matmul %30, %29, %cst_17 {dimension_numbers = #tpu.dot_dimension_numbers<[1], [0], [0], [1], [0, 0, 1, 1], [], []>} : vector<32x32xf32>, vector<32x128xf32>, vector<32x128xf32> -> vector<32x128xf32>
    %35 = vector.broadcast %31 : vector<32x1xf32> to vector<32x128xf32>
    %36 = arith.addf %34, %35 : vector<32x128xf32>
    %cst_18 = arith.constant 0.000000e+00 : f32
    %37 = vector.broadcast %cst_18 : f32 to vector<32x128xf32>
    %38 = arith.maximumf %36, %37 : vector<32x128xf32>
    %cst_19 = arith.constant dense<0.000000e+00> : vector<128xf32>
    %39 = vector.multi_reduction <add>, %38, %cst_19 [0] : vector<32x128xf32> to vector<128xf32>
    %40 = vector.shape_cast %39 : vector<128xf32> to vector<1x128xf32>
    %cst_20 = arith.constant 3.125000e-02 : f32
    %41 = vector.broadcast %cst_20 : f32 to vector<1x128xf32>
    %42 = arith.mulf %40, %41 : vector<1x128xf32>
    %43 = vector.broadcast %42 : vector<1x128xf32> to vector<32x128xf32>
    %44 = arith.subf %38, %43 : vector<32x128xf32>
    %45 = arith.mulf %44, %44 : vector<32x128xf32>
    %cst_21 = arith.constant dense<0.000000e+00> : vector<128xf32>
    %46 = vector.multi_reduction <add>, %45, %cst_21 [0] : vector<32x128xf32> to vector<128xf32>
    %47 = vector.shape_cast %46 : vector<128xf32> to vector<1x128xf32>
    %cst_22 = arith.constant 3.125000e-02 : f32
    %48 = vector.broadcast %cst_22 : f32 to vector<1x128xf32>
    %49 = arith.mulf %47, %48 : vector<1x128xf32>
    %cst_23 = arith.constant 9.99999974E-6 : f32
    %50 = vector.broadcast %cst_23 : f32 to vector<1x128xf32>
    %51 = arith.addf %49, %50 : vector<1x128xf32>
    %52 = math.rsqrt %51 : vector<1x128xf32>
    %53 = vector.broadcast %52 : vector<1x128xf32> to vector<32x128xf32>
    %54 = arith.mulf %44, %53 : vector<32x128xf32>
    %55 = vector.broadcast %32 : vector<32x1xf32> to vector<32x128xf32>
    %56 = arith.mulf %54, %55 : vector<32x128xf32>
    %57 = vector.broadcast %33 : vector<32x1xf32> to vector<32x128xf32>
    %58 = arith.addf %56, %57 : vector<32x128xf32>
    %c64 = arith.constant 64 : index
    %c0_24 = arith.constant 0 : index
    %59 = vector.load %arg2[%c64, %c0_24] : memref<72x128xf32, #tpu.memory_space<vmem>>, vector<8x32xf32>
    %c64_25 = arith.constant 64 : index
    %c32_26 = arith.constant 32 : index
    %60 = vector.load %arg2[%c64_25, %c32_26] : memref<72x128xf32, #tpu.memory_space<vmem>>, vector<8x1xf32>
    %c64_27 = arith.constant 64 : index
    %c33_28 = arith.constant 33 : index
    %61 = vector.load %arg2[%c64_27, %c33_28] : memref<72x128xf32, #tpu.memory_space<vmem>>, vector<8x1xf32>
    %c64_29 = arith.constant 64 : index
    %c34_30 = arith.constant 34 : index
    %62 = vector.load %arg2[%c64_29, %c34_30] : memref<72x128xf32, #tpu.memory_space<vmem>>, vector<8x1xf32>
    %cst_31 = arith.constant dense<0.000000e+00> : vector<8x128xf32>
    %63 = tpu.matmul %59, %58, %cst_31 {dimension_numbers = #tpu.dot_dimension_numbers<[1], [0], [0], [1], [0, 0, 1, 1], [], []>} : vector<8x32xf32>, vector<32x128xf32>, vector<8x128xf32> -> vector<8x128xf32>
    %64 = vector.broadcast %60 : vector<8x1xf32> to vector<8x128xf32>
    %65 = arith.addf %63, %64 : vector<8x128xf32>
    %66 = math.tanh %65 : vector<8x128xf32>
    %cst_32 = arith.constant dense<0.000000e+00> : vector<128xf32>
    %67 = vector.multi_reduction <add>, %66, %cst_32 [0] : vector<8x128xf32> to vector<128xf32>
    %68 = vector.shape_cast %67 : vector<128xf32> to vector<1x128xf32>
    %cst_33 = arith.constant 1.250000e-01 : f32
    %69 = vector.broadcast %cst_33 : f32 to vector<1x128xf32>
    %70 = arith.mulf %68, %69 : vector<1x128xf32>
    %71 = vector.broadcast %70 : vector<1x128xf32> to vector<8x128xf32>
    %72 = arith.subf %66, %71 : vector<8x128xf32>
    %73 = arith.mulf %72, %72 : vector<8x128xf32>
    %cst_34 = arith.constant dense<0.000000e+00> : vector<128xf32>
    %74 = vector.multi_reduction <add>, %73, %cst_34 [0] : vector<8x128xf32> to vector<128xf32>
    %75 = vector.shape_cast %74 : vector<128xf32> to vector<1x128xf32>
    %cst_35 = arith.constant 1.250000e-01 : f32
    %76 = vector.broadcast %cst_35 : f32 to vector<1x128xf32>
    %77 = arith.mulf %75, %76 : vector<1x128xf32>
    %cst_36 = arith.constant 9.99999974E-6 : f32
    %78 = vector.broadcast %cst_36 : f32 to vector<1x128xf32>
    %79 = arith.addf %77, %78 : vector<1x128xf32>
    %80 = math.rsqrt %79 : vector<1x128xf32>
    %81 = vector.broadcast %80 : vector<1x128xf32> to vector<8x128xf32>
    %82 = arith.mulf %72, %81 : vector<8x128xf32>
    %83 = vector.broadcast %61 : vector<8x1xf32> to vector<8x128xf32>
    %84 = arith.mulf %82, %83 : vector<8x128xf32>
    %85 = vector.broadcast %62 : vector<8x1xf32> to vector<8x128xf32>
    %86 = arith.addf %84, %85 : vector<8x128xf32>
    %c0_37 = arith.constant 0 : index
    %c0_38 = arith.constant 0 : index
    %87 = vector.load %arg3[%c0_37, %c0_38] : memref<8x128xf32, #tpu.memory_space<vmem>>, vector<8x128xf32>
    tpu.vector_store %arg3[%c0_37, %c0_38], %86 {strides = array<i32>} : memref<8x128xf32, #tpu.memory_space<vmem>>, vector<8x128xf32>,
    return
  }
  func.func @transform_0(%arg0: i32) -> (i32, i32) {
    %c0_i32 = arith.constant 0 : i32
    %c0_i32_0 = arith.constant 0 : i32
    return %arg0, %c0_i32 : i32, i32
  }
  func.func @transform_1(%arg0: i32) -> (i32, i32) {
    %c0_i32 = arith.constant 0 : i32
    %c0_i32_0 = arith.constant 0 : i32
    %c0_i32_1 = arith.constant 0 : i32
    return %c0_i32, %c0_i32_0 : i32, i32
  }
  func.func @transform_2(%arg0: i32) -> (i32, i32) {
    %c0_i32 = arith.constant 0 : i32
    %c0_i32_0 = arith.constant 0 : i32
    return %c0_i32, %arg0 : i32, i32
  }
}

</mosaic_0001>

<llo_original>
// kernel: tpu_custom_call.1
$region0: #{tpu_custom_call.1}
  #allocation0 [shape = 'u32[]', space=smem, size = 0x4, offset = 0x4, fixed_abs, tag = 'smem constant byte address 0x4 - core index']
  #allocation1 [shape = 'u32[72,128]{1,0:T(1,128)}', space=vmem, size = 0x9000, scoped, tag = 'internal scratch']
  %s0 = inlined_call_operand.vmem [shape: f32[200,16], index: 0, kind: input, shape index: {}]
  %s1 = inlined_call_operand.vmem [shape: f32[72,128], index: 1, kind: input, shape index: {}]
  %s2 = inlined_call_operand.hbm [shape: f32[8,200], index: 2, kind: output, shape index: {}]
  %s3 = sld [smem:[#allocation0]]
  $region41: #{tpu_custom_call.1} parent=0
    _
  %s5 = ssub.s32 1, %s3
  %s6 = scalar_select 0, %s5, %s3
  $region1: #{tpu_custom_call.1} parent=0
    #allocation2 [shape = 'u8[8192]{0}', space=vmem, size = 0x2000, scoped, tag = 'output window, operand 0']
    #allocation3 [shape = 's32[2]{0}', space=sflag, size = 0x8, scoped, tag = 'scoped memory for tpu_custom_call.1']
    %7 = vsyncpa [#allocation3], 0
    %s8 = scalar_lea.sflag [#allocation3], 1
    %9 = vsyncpa %s8, 0
    loop: start=0, step=1, limit=4
    $region2: #{tpu_custom_call.1} parent=1 // loop_pre_header
      _
    $region3: #{tpu_custom_call.1} parent=1 // loop_header
      %s11 = sphi 0, %s15
      %p12 = scmp.ge.s32.totalorder %s11, 4
      %s21 = sphi 0, %s23
      %s24 = sphi 0, %s21
      %s25 = sphi 0, %s24
      %s41 = sphi 0, %s25
      %s45 = sphi 0, %s45
      %s47 = sphi 0, %s45
      %s48 = sphi 0, %s47
      %s62 = sphi 0, %s48
      %s68 = sphi 0, %s70
      %s71 = sphi 0, %s68
      %s72 = sphi 0, %s71
      %s88 = sphi 0, %s72
    $region4: #{tpu_custom_call.1} parent=1 // loop_header_branch
      %14 = sbr.rel (%p12) target = $region8
    $region5: #{tpu_custom_call.1} parent=1 // loop_body
      %s16 = ssub.s32 %s11, 1
      %s17 = ssub.s32 %s11, 2
      %s18 = sadd.s32 %s11, 1
      %s19 = ssub.s32 %s11, %s18
      %p20 = scmp.eq.s32.totalorder %s19, 0
      %s22 = sadd.s32 %s21, 1
      %s23 = scalar_select %p20, %s21, %s22
      %p26 = pneg %p20
      %p27 = scmp.eq.s32.totalorder %s11, 1
      %p28 = por %p26, %p27
      %p29 = scmp.ne.s32.totalorder %s21, %s24
      %p30 = scmp.eq.s32.totalorder %s11, 0
      %p31 = por %p29, %p30
      %p32 = scmp.ne.s32.totalorder %s21, %s24
      %p33 = scmp.eq.s32.totalorder %s16, 1
      %p34 = por %p32, %p33
      %p35 = scmp.ne.s32.totalorder %s24, %s25
      %p36 = scmp.eq.s32.totalorder %s16, 0
      %p37 = por %p35, %p36
      %p38 = scmp.ne.s32.totalorder %s24, %s25
      %p39 = scmp.eq.s32.totalorder %s17, 1
      %p40 = por %p38, %p39
      %p42 = scmp.ne.s32.totalorder %s25, %s41
      %p43 = scmp.eq.s32.totalorder %s17, 0
      %p44 = por %p42, %p43
      %s46 = sadd.s32 %s45, 1
      %p49 = scmp.eq.s32.totalorder %s11, 1
      %p50 = scmp.ne.s32.totalorder %s45, %s47
      %p51 = scmp.eq.s32.totalorder %s11, 0
      %p52 = por %p50, %p51
      %p53 = scmp.ne.s32.totalorder %s45, %s47
      %p54 = scmp.eq.s32.totalorder %s16, 1
      %p55 = por %p53, %p54
      %p56 = scmp.ne.s32.totalorder %s47, %s48
      %p57 = scmp.eq.s32.totalorder %s16, 0
      %p58 = por %p56, %p57
      %p59 = scmp.ne.s32.totalorder %s47, %s48
      %p60 = scmp.eq.s32.totalorder %s17, 1
      %p61 = por %p59, %p60
      %p63 = scmp.ne.s32.totalorder %s48, %s62
      %p64 = scmp.eq.s32.totalorder %s17, 0
      %p65 = por %p63, %p64
      %s66 = ssub.s32 %s11, %s18
      %p67 = scmp.eq.s32.totalorder %s66, 0
      %s69 = sadd.s32 %s68, 1
      %s70 = scalar_select %p67, %s68, %s69
      %p73 = pneg %p67
      %p74 = scmp.eq.s32.totalorder %s11, 1
      %p75 = por %p73, %p74
      %p76 = scmp.ne.s32.totalorder %s68, %s71
      %p77 = scmp.eq.s32.totalorder %s11, 0
      %p78 = por %p76, %p77
      %p79 = scmp.ne.s32.totalorder %s68, %s71
      %p80 = scmp.eq.s32.totalorder %s16, 1
      %p81 = por %p79, %p80
      %p82 = scmp.ne.s32.totalorder %s71, %s72
      %p83 = scmp.eq.s32.totalorder %s16, 0
      %p84 = por %p82, %p83
      %p85 = scmp.ne.s32.totalorder %s71, %s72
      %p86 = scmp.eq.s32.totalorder %s17, 1
      %p87 = por %p85, %p86
      %p89 = scmp.ne.s32.totalorder %s72, %s88
      %p90 = scmp.eq.s32.totalorder %s17, 0
      %p91 = por %p89, %p90
      %p92 = scmp.le.s32.totalorder 1, %s11
      %p93 = scmp.lt.s32.totalorder %s11, 3
      %p94 = pnand %p92, %p93
      %p95 = pneg %p94
      // Predicated region
      $region9: #{tpu_custom_call.1} parent=5 // pred_check
        _
      $region10: #{tpu_custom_call.1} parent=5 // pred_check_branch
        %97 = sbr.rel (%p94) target = $region12
      $region11: #{tpu_custom_call.1} parent=5 // pred_region
        %s98 = ssub.s32 %s11, 1
        // Predicated region
        $region13: #{tpu_custom_call.1} parent=11 // pred_check
          %p99 = pneg %p58
        $region14: #{tpu_custom_call.1} parent=11 // pred_check_branch
          %101 = sbr.rel (%p99) target = $region16
        $region15: #{tpu_custom_call.1} parent=11 // pred_region
          _
        $region16: #{tpu_custom_call.1} parent=11 // pred_fallthru
          _
      $region12: #{tpu_custom_call.1} parent=5 // pred_fallthru
        _
      %p102 = scmp.lt.s32.totalorder %s11, 2
      // Predicated region
      $region17: #{tpu_custom_call.1} parent=5 // pred_check
        %p103 = pneg %p102
      $region18: #{tpu_custom_call.1} parent=5 // pred_check_branch
        %105 = sbr.rel (%p103) target = $region20
      $region19: #{tpu_custom_call.1} parent=5 // pred_region
        // Predicated region
        $region21: #{tpu_custom_call.1} parent=19 // pred_check
          %p106 = pneg %p31
        $region22: #{tpu_custom_call.1} parent=19 // pred_check_branch
          %108 = sbr.rel (%p106) target = $region24
        $region23: #{tpu_custom_call.1} parent=19 // pred_region
          %s109 = smul.u32 16, %s11
          %s110 = ssub.s32 25, %s109
          %p111 = scmp.lt.s32.totalorder %s110, 16
          %s112 = scalar_select %p111, %s110, 16
          %s113 = smul.u32 8, %s112
          %p114 = scmp.lt.s32.totalorder %s109, 24
          %s115 = scalar_select %p114, %s109, 24
          %s116 = smul.addr %s115, 8
          %s117 = scalar_lea.vmem %s0, %s116
          %s118 = smul.u32 16, %s11
          %s119 = ssub.s32 25, %s118
          %p120 = scmp.lt.s32.totalorder %s119, 16
          %s121 = scalar_select %p120, %s119, 16
          %s122 = smul.u32 8, %s121
        $region24: #{tpu_custom_call.1} parent=19 // pred_fallthru
          _
      $region20: #{tpu_custom_call.1} parent=5 // pred_fallthru
        _
      %p123 = scmp.le.s32.totalorder 1, %s11
      %p124 = scmp.lt.s32.totalorder %s11, 3
      %p125 = pnand %p123, %p124
      %p126 = pneg %p125
      // Predicated region
      $region25: #{tpu_custom_call.1} parent=5 // pred_check
        _
      $region26: #{tpu_custom_call.1} parent=5 // pred_check_branch
        %128 = sbr.rel (%p125) target = $region28
      $region27: #{tpu_custom_call.1} parent=5 // pred_region
        %s129 = ssub.s32 %s11, 1
        %s130 = smul.u32 16, %s16
        %s131 = ssub.s32 25, %s130
        %p132 = scmp.lt.s32.totalorder %s131, 16
        %s133 = scalar_select %p132, %s131, 16
        %s134 = smul.u32 8, %s133
        %p135 = scmp.lt.s32.totalorder %s130, 24
        %s136 = scalar_select %p135, %s130, 24
        %s137 = smul.addr %s136, 8
        %s138 = scalar_lea.vmem %s0, %s137
        %p139 = pneg %p37
        %p140 = pneg %p34
        %p141 = pneg %p58
        %p142 = pneg %p55
        %p143 = pneg %p84
        %p144 = pneg %p81
        %s145 = sand.u32 %s71, 1
        %s146 = scalar_lea.sflag [#allocation3], %s145
        %s147 = sand.u32 %s71, 1
        %s148 = smul.addr %s147, 8
        %s149 = scalar_lea.vmem [#allocation2], %s148
        %s150 = smul.u32 16, %s16
        %s151 = ssub.s32 25, %s150
        %p152 = scmp.lt.s32.totalorder %s151, 16
        %s153 = scalar_select %p152, %s151, 16
        %s154 = smul.u32 8, %s153
        %p155 = scmp.lt.s32.totalorder %s150, 24
        %s156 = scalar_select %p155, %s150, 24
        %s157 = smul.addr %s156, 8
        %s158 = scalar_lea.vmem %s0, %s157
        %s159 = smul.u32 16, %s16
        %s160 = ssub.s32 25, %s159
        %p161 = scmp.lt.s32.totalorder %s160, 16
        %s162 = scalar_select %p161, %s160, 16
        %s163 = smul.u32 8, %s162
        %v164 = vld [vmem:[%s158] sm:$0xff]
        %v165 = vld [vmem:[%s158 + $0x8] sm:$0xff]
        %v166 = vld [vmem:[%s158 + $0x10] sm:$0xff]
        %v167 = vld [vmem:[%s158 + $0x18] sm:$0xff]
        %v168 = vld [vmem:[%s158 + $0x20] sm:$0xff]
        %v169 = vld [vmem:[%s158 + $0x28] sm:$0xff]
        %v170 = vld [vmem:[%s158 + $0x30] sm:$0xff]
        %v171 = vld [vmem:[%s158 + $0x38] sm:$0xff]
        %v172 = vld [vmem:[%s158 + $0x40] sm:$0xff]
        %v173 = vld [vmem:[%s158 + $0x48] sm:$0xff]
        %v174 = vld [vmem:[%s158 + $0x50] sm:$0xff]
        %v175 = vld [vmem:[%s158 + $0x58] sm:$0xff]
        %v176 = vld [vmem:[%s158 + $0x60] sm:$0xff]
        %v177 = vld [vmem:[%s158 + $0x68] sm:$0xff]
        %v178 = vld [vmem:[%s158 + $0x70] sm:$0xff]
        %v179 = vld [vmem:[%s158 + $0x78] sm:$0xff]
        %v180 = vld [vmem:[%s1] sm:$0xff]
        %v181 = vld [vmem:[%s1 + $0x8] sm:$0xff]
        %v182 = vld [vmem:[%s1 + $0x10] sm:$0xff]
        %v183 = vld [vmem:[%s1 + $0x18] sm:$0xff]
        %185 = vset.pattern.permute.xlu0 16
        %186 = vperm.xlu0 %185, %v180
        %v187 = vpop.permute.xlu0 %186
        %190 = vset.pattern.permute.xlu0 16
        %191 = vperm.xlu0 %190, %v181
        %v192 = vpop.permute.xlu0 %191
        %195 = vset.pattern.permute.xlu0 16
        %196 = vperm.xlu0 %195, %v182
        %v197 = vpop.permute.xlu0 %196
        %200 = vset.pattern.permute.xlu0 16
        %201 = vperm.xlu0 %200, %v183
        %v202 = vpop.permute.xlu0 %201
        %vm204 = vcmask 130048
        %v205 = vsel %vm204, %v180, 0
        %v207 = vsel %vm204, %v181, 0
        %v209 = vsel %vm204, %v182, 0
        %v211 = vsel %vm204, %v183, 0
        %v214 = vsel %vm204, %v164, 0
        %v217 = vsel %vm204, %v165, 0
        %v220 = vsel %vm204, %v166, 0
        %v223 = vsel %vm204, %v167, 0
        %v226 = vsel %vm204, %v168, 0
        %v229 = vsel %vm204, %v169, 0
        %v232 = vsel %vm204, %v170, 0
        %v235 = vsel %vm204, %v171, 0
        %v238 = vsel %vm204, %v172, 0
        %v241 = vsel %vm204, %v173, 0
        %v244 = vsel %vm204, %v174, 0
        %v247 = vsel %vm204, %v175, 0
        %v250 = vsel %vm204, %v176, 0
        %v253 = vsel %vm204, %v177, 0
        %v256 = vsel %vm204, %v178, 0
        %v259 = vsel %vm204, %v179, 0
        %261 = vmatpush.xpose.msra.mxu0 %v259
        %262 = vmatpush.xpose.msra.mxu0 %v256
        %263 = vmatpush.xpose.msra.mxu0 %v253
        %264 = vmatpush.xpose.msra.mxu0 %v250
        %265 = vmatpush.xpose.msra.mxu0 %v247
        %266 = vmatpush.xpose.msra.mxu0 %v244
        %267 = vmatpush.xpose.msra.mxu0 %v241
        %268 = vmatpush.xpose.msra.mxu0 %v238
        %269 = vmatpush.xpose.msra.mxu0 %v235
        %270 = vmatpush.xpose.msra.mxu0 %v232
        %271 = vmatpush.xpose.msra.mxu0 %v229
        %272 = vmatpush.xpose.msra.mxu0 %v226
        %273 = vmatpush.xpose.msra.mxu0 %v223
        %274 = vmatpush.xpose.msra.mxu0 %v220
        %275 = vmatpush.xpose.msra.mxu0 %v217
        %276 = vmatpush.xpose.msra.mxu0 %v214
        %277 = vmatmul.f32.gmra.mxu0 %v205
        %v278 = vpop.f32.mrf.mxu0
        %v279 = vadd.f32 %v187, %v278
        %280 = vmatmul.f32.gmra.mxu0 %v207
        %v281 = vpop.f32.mrf.mxu0
        %v282 = vadd.f32 %v192, %v281
        %283 = vmatmul.f32.gmra.mxu0 %v209
        %v284 = vpop.f32.mrf.mxu0
        %v285 = vadd.f32 %v197, %v284
        %286 = vmatmul.f32.gmra.mxu0 %v211
        %v287 = vpop.f32.mrf.mxu0
        %v288 = vadd.f32 %v202, %v287
        %289 = vdwg.mxu0
        %v290 = vmax.f32 %v279, 0.0
        %v291 = vmax.f32 %v282, 0.0
        %v292 = vmax.f32 %v285, 0.0
        %v293 = vmax.f32 %v288, 0.0
        %v294 = vadd.f32 %v290, %v291
        %v295 = vadd.f32 %v294, %v292
        %v296 = vadd.f32 %v295, %v293
        %v297 = vrot.slane %v296, 4
        %v298 = vadd.f32 %v296, %v297
        %v299 = vrot.slane %v298, 2
        %v300 = vadd.f32 %v298, %v299
        %v301 = vrot.slane %v300, 1
        %v302 = vadd.f32 %v300, %v301
        %v303 = vmul.f32 %v302, 0.03125
        %v304 = vsub.f32 %v290, %v303
        %v305 = vsub.f32 %v291, %v303
        %v306 = vsub.f32 %v292, %v303
        %v307 = vsub.f32 %v293, %v303
        %v308 = vmul.f32 %v304, %v304
        %v309 = vmul.f32 %v305, %v305
        %v310 = vmul.f32 %v306, %v306
        %v311 = vmul.f32 %v307, %v307
        %v312 = vadd.f32 %v308, %v309
        %v313 = vadd.f32 %v312, %v310
        %v314 = vadd.f32 %v313, %v311
        %v315 = vrot.slane %v314, 4
        %v316 = vadd.f32 %v314, %v315
        %v317 = vrot.slane %v316, 2
        %v318 = vadd.f32 %v316, %v317
        %v319 = vrot.slane %v318, 1
        %v320 = vadd.f32 %v318, %v319
        %v321 = vmul.f32 %v320, 0.03125
        %v322 = vadd.f32 %v321, 1e-05
        %v323 = vrsqrt.pop %v322
        %v324 = vmul.f32 %v323, %v322
        %v325 = vmul.f32 %v324, %v323
        %v326 = vmul.f32 0.5, %v325
        %v327 = vsub.f32 1.5, %v326
        %v328 = vmul.f32 %v323, %v327
        %vm329 = vweird.f32 %v322
        %vm330 = vweird.f32 %v323
        %vm331 = vmor %vm329, %vm330
        %v332 = vsel %vm331, %v323, %v328
        %v333 = vmul.f32 %v304, %v332
        %v334 = vmul.f32 %v305, %v332
        %v335 = vmul.f32 %v306, %v332
        %v336 = vmul.f32 %v307, %v332
        %337 = vset.pattern.permute.xlu0 17
        %338 = vperm.xlu0 %337, %v180
        %v339 = vpop.permute.xlu0 %338
        %341 = vset.pattern.permute.xlu0 17
        %342 = vperm.xlu0 %341, %v181
        %v343 = vpop.permute.xlu0 %342
        %345 = vset.pattern.permute.xlu0 17
        %346 = vperm.xlu0 %345, %v182
        %v347 = vpop.permute.xlu0 %346
        %349 = vset.pattern.permute.xlu0 17
        %350 = vperm.xlu0 %349, %v183
        %v351 = vpop.permute.xlu0 %350
        %v353 = vmul.f32 %v333, %v339
        %v354 = vmul.f32 %v334, %v343
        %v355 = vmul.f32 %v335, %v347
        %v356 = vmul.f32 %v336, %v351
        %357 = vset.pattern.permute.xlu0 18
        %358 = vperm.xlu0 %357, %v180
        %v359 = vpop.permute.xlu0 %358
        %361 = vset.pattern.permute.xlu0 18
        %362 = vperm.xlu0 %361, %v181
        %v363 = vpop.permute.xlu0 %362
        %365 = vset.pattern.permute.xlu0 18
        %366 = vperm.xlu0 %365, %v182
        %v367 = vpop.permute.xlu0 %366
        %369 = vset.pattern.permute.xlu0 18
        %370 = vperm.xlu0 %369, %v183
        %v371 = vpop.permute.xlu0 %370
        %v373 = vadd.f32 %v353, %v359
        %v374 = vadd.f32 %v354, %v363
        %v375 = vadd.f32 %v355, %v367
        %v376 = vadd.f32 %v356, %v371
        %v377 = vld [vmem:[%s1 + $0x20] sm:$0xff]
        %v378 = vld [vmem:[%s1 + $0x28] sm:$0xff]
        %v379 = vld [vmem:[%s1 + $0x30] sm:$0xff]
        %v380 = vld [vmem:[%s1 + $0x38] sm:$0xff]
        %382 = vset.pattern.permute.xlu0 32
        %383 = vperm.xlu0 %382, %v377
        %v384 = vpop.permute.xlu0 %383
        %387 = vset.pattern.permute.xlu0 32
        %388 = vperm.xlu0 %387, %v378
        %v389 = vpop.permute.xlu0 %388
        %392 = vset.pattern.permute.xlu0 32
        %393 = vperm.xlu0 %392, %v379
        %v394 = vpop.permute.xlu0 %393
        %397 = vset.pattern.permute.xlu0 32
        %398 = vperm.xlu0 %397, %v380
        %v399 = vpop.permute.xlu0 %398
        %vm401 = vcmask 261120
        %v402 = vsel %vm401, %v377, 0
        %v404 = vsel %vm401, %v378, 0
        %v406 = vsel %vm401, %v379, 0
        %v408 = vsel %vm401, %v380, 0
        %410 = vmatpush.msra.mxu0 0.0
        %411 = vmatpush.msra.mxu0 0.0
        %412 = vmatpush.msra.mxu0 0.0
        %413 = vmatpush.msra.mxu0 0.0
        %414 = vmatpush.msra.mxu0 0.0
        %415 = vmatpush.msra.mxu0 0.0
        %416 = vmatpush.msra.mxu0 0.0
        %417 = vmatpush.msra.mxu0 0.0
        %418 = vmatpush.msra.mxu0 0.0
        %419 = vmatpush.msra.mxu0 0.0
        %420 = vmatpush.msra.mxu0 0.0
        %421 = vmatpush.msra.mxu0 0.0
        %422 = vmatpush.msra.mxu0 %v376
        %423 = vmatpush.msra.mxu0 %v375
        %424 = vmatpush.msra.mxu0 %v374
        %425 = vmatpush.msra.mxu0 %v373
        %426 = vmatmul.f32.gmra.mxu0 %v402
        %v427 = vpop.f32.mrf.mxu0
        %v428 = vadd.f32 %v384, %v427
        %429 = vmatmul.f32.gmra.mxu0 %v404
        %v430 = vpop.f32.mrf.mxu0
        %v431 = vadd.f32 %v389, %v430
        %432 = vmatmul.f32.gmra.mxu0 %v406
        %v433 = vpop.f32.mrf.mxu0
        %v434 = vadd.f32 %v394, %v433
        %435 = vmatmul.f32.gmra.mxu0 %v408
        %v436 = vpop.f32.mrf.mxu0
        %v437 = vadd.f32 %v399, %v436
        %438 = vdwg.mxu0
        %v439 = vmax.f32 %v428, 0.0
        %v440 = vmax.f32 %v431, 0.0
        %v441 = vmax.f32 %v434, 0.0
        %v442 = vmax.f32 %v437, 0.0
        %v443 = vadd.f32 %v439, %v440
        %v444 = vadd.f32 %v443, %v441
        %v445 = vadd.f32 %v444, %v442
        %v446 = vrot.slane %v445, 4
        %v447 = vadd.f32 %v445, %v446
        %v448 = vrot.slane %v447, 2
        %v449 = vadd.f32 %v447, %v448
        %v450 = vrot.slane %v449, 1
        %v451 = vadd.f32 %v449, %v450
        %v452 = vmul.f32 %v451, 0.03125
        %v453 = vsub.f32 %v439, %v452
        %v454 = vsub.f32 %v440, %v452
        %v455 = vsub.f32 %v441, %v452
        %v456 = vsub.f32 %v442, %v452
        %v457 = vmul.f32 %v453, %v453
        %v458 = vmul.f32 %v454, %v454
        %v459 = vmul.f32 %v455, %v455
        %v460 = vmul.f32 %v456, %v456
        %v461 = vadd.f32 %v457, %v458
        %v462 = vadd.f32 %v461, %v459
        %v463 = vadd.f32 %v462, %v460
        %v464 = vrot.slane %v463, 4
        %v465 = vadd.f32 %v463, %v464
        %v466 = vrot.slane %v465, 2
        %v467 = vadd.f32 %v465, %v466
        %v468 = vrot.slane %v467, 1
        %v469 = vadd.f32 %v467, %v468
        %v470 = vmul.f32 %v469, 0.03125
        %v471 = vadd.f32 %v470, 1e-05
        %v472 = vrsqrt.pop %v471
        %v473 = vmul.f32 %v472, %v471
        %v474 = vmul.f32 %v473, %v472
        %v475 = vmul.f32 0.5, %v474
        %v476 = vsub.f32 1.5, %v475
        %v477 = vmul.f32 %v472, %v476
        %vm478 = vweird.f32 %v471
        %vm479 = vweird.f32 %v472
        %vm480 = vmor %vm478, %vm479
        %v481 = vsel %vm480, %v472, %v477
        %v482 = vmul.f32 %v453, %v481
        %v483 = vmul.f32 %v454, %v481
        %v484 = vmul.f32 %v455, %v481
        %v485 = vmul.f32 %v456, %v481
        %486 = vset.pattern.permute.xlu0 33
        %487 = vperm.xlu0 %486, %v377
        %v488 = vpop.permute.xlu0 %487
        %490 = vset.pattern.permute.xlu0 33
        %491 = vperm.xlu0 %490, %v378
        %v492 = vpop.permute.xlu0 %491
        %494 = vset.pattern.permute.xlu0 33
        %495 = vperm.xlu0 %494, %v379
        %v496 = vpop.permute.xlu0 %495
        %498 = vset.pattern.permute.xlu0 33
        %499 = vperm.xlu0 %498, %v380
        %v500 = vpop.permute.xlu0 %499
        %v502 = vmul.f32 %v482, %v488
        %v503 = vmul.f32 %v483, %v492
        %v504 = vmul.f32 %v484, %v496
        %v505 = vmul.f32 %v485, %v500
        %506 = vset.pattern.permute.xlu0 34
        %507 = vperm.xlu0 %506, %v377
        %v508 = vpop.permute.xlu0 %507
        %510 = vset.pattern.permute.xlu0 34
        %511 = vperm.xlu0 %510, %v378
        %v512 = vpop.permute.xlu0 %511
        %514 = vset.pattern.permute.xlu0 34
        %515 = vperm.xlu0 %514, %v379
        %v516 = vpop.permute.xlu0 %515
        %518 = vset.pattern.permute.xlu0 34
        %519 = vperm.xlu0 %518, %v380
        %v520 = vpop.permute.xlu0 %519
        %v522 = vadd.f32 %v502, %v508
        %v523 = vadd.f32 %v503, %v512
        %v524 = vadd.f32 %v504, %v516
        %v525 = vadd.f32 %v505, %v520
        %v526 = vld [vmem:[%s1 + $0x40] sm:$0xff]
        %528 = vset.pattern.permute.xlu0 32
        %529 = vperm.xlu0 %528, %v526
        %v530 = vpop.permute.xlu0 %529
        %v532 = vsel %vm401, %v526, 0
        %534 = vmatpush.msra.mxu0 0.0
        %535 = vmatpush.msra.mxu0 0.0
        %536 = vmatpush.msra.mxu0 0.0
        %537 = vmatpush.msra.mxu0 0.0
        %538 = vmatpush.msra.mxu0 0.0
        %539 = vmatpush.msra.mxu0 0.0
        %540 = vmatpush.msra.mxu0 0.0
        %541 = vmatpush.msra.mxu0 0.0
        %542 = vmatpush.msra.mxu0 0.0
        %543 = vmatpush.msra.mxu0 0.0
        %544 = vmatpush.msra.mxu0 0.0
        %545 = vmatpush.msra.mxu0 0.0
        %546 = vmatpush.msra.mxu0 %v525
        %547 = vmatpush.msra.mxu0 %v524
        %548 = vmatpush.msra.mxu0 %v523
        %549 = vmatpush.msra.mxu0 %v522
        %550 = vmatmul.f32.gmra.mxu0 %v532
        %v551 = vpop.f32.mrf.mxu0
        %v552 = vadd.f32 %v530, %v551
        %553 = vdwg.mxu0
        %v554 = vtanh.pop %v552
        %v555 = vrot.slane %v554, 4
        %v556 = vadd.f32 %v554, %v555
        %v557 = vrot.slane %v556, 2
        %v558 = vadd.f32 %v556, %v557
        %v559 = vrot.slane %v558, 1
        %v560 = vadd.f32 %v558, %v559
        %v561 = vmul.f32 %v560, 0.125
        %v562 = vsub.f32 %v554, %v561
        %v563 = vmul.f32 %v562, %v562
        %v564 = vrot.slane %v563, 4
        %v565 = vadd.f32 %v563, %v564
        %v566 = vrot.slane %v565, 2
        %v567 = vadd.f32 %v565, %v566
        %v568 = vrot.slane %v567, 1
        %v569 = vadd.f32 %v567, %v568
        %v570 = vmul.f32 %v569, 0.125
        %v571 = vadd.f32 %v570, 1e-05
        %v572 = vrsqrt.pop %v571
        %v573 = vmul.f32 %v572, %v571
        %v574 = vmul.f32 %v573, %v572
        %v575 = vmul.f32 0.5, %v574
        %v576 = vsub.f32 1.5, %v575
        %v577 = vmul.f32 %v572, %v576
        %vm578 = vweird.f32 %v571
        %vm579 = vweird.f32 %v572
        %vm580 = vmor %vm578, %vm579
        %v581 = vsel %vm580, %v572, %v577
        %v582 = vmul.f32 %v562, %v581
        %583 = vset.pattern.permute.xlu0 33
        %584 = vperm.xlu0 %583, %v526
        %v585 = vpop.permute.xlu0 %584
        %v587 = vmul.f32 %v582, %v585
        %588 = vset.pattern.permute.xlu0 34
        %589 = vperm.xlu0 %588, %v526
        %v590 = vpop.permute.xlu0 %589
        %v592 = vadd.f32 %v587, %v590
        %593 = vst [vmem:[%s149] sm:$0xff] %v592
        %s594 = sand.u32 %s71, 1
        %s595 = scalar_lea.sflag [#allocation3], %s594
        %s596 = sand.u32 %s71, 1
        %s597 = smul.addr %s596, 8
        %s598 = scalar_lea.vmem [#allocation2], %s597
        // Predicated region
        $region29: #{tpu_custom_call.1} parent=27 // pred_check
          %p599 = pneg %p81
        $region30: #{tpu_custom_call.1} parent=27 // pred_check_branch
          %601 = sbr.rel (%p599) target = $region32
        $region31: #{tpu_custom_call.1} parent=27 // pred_region
          %603 = vsyncadd %s595, 0
          %s604 = smul.addr %s16, 8
          %s605 = scalar_lea.hbm %s2, %s604
          %s607 = sshll.u32 %s598, 4
          %s608 = int_to_ptr.vmem [resolvable:$true] %s607
          %s609 = sshll.u32 %s605, 4
          %s610 = int_to_ptr.hbm [resolvable:$true] %s609
          %612 = dma.vmem_to_hbm [thread:$0]  %s608, 128, %s610, %s595
        $region32: #{tpu_custom_call.1} parent=27 // pred_fallthru
          _
      $region28: #{tpu_custom_call.1} parent=5 // pred_fallthru
        _
      %p613 = scmp.le.s32.totalorder 2, %s11
      // Predicated region
      $region33: #{tpu_custom_call.1} parent=5 // pred_check
        %p614 = pneg %p613
      $region34: #{tpu_custom_call.1} parent=5 // pred_check_branch
        %616 = sbr.rel (%p614) target = $region36
      $region35: #{tpu_custom_call.1} parent=5 // pred_region
        %s617 = ssub.s32 %s11, 2
        // Predicated region
        $region37: #{tpu_custom_call.1} parent=35 // pred_check
          %p618 = pneg %p87
        $region38: #{tpu_custom_call.1} parent=35 // pred_check_branch
          %620 = sbr.rel (%p618) target = $region40
        $region39: #{tpu_custom_call.1} parent=35 // pred_region
          %s621 = sand.u32 %s72, 1
          %s622 = scalar_lea.sflag [#allocation3], %s621
          %s623 = sand.u32 %s72, 1
          %s624 = smul.addr %s623, 8
          %s625 = scalar_lea.vmem [#allocation2], %s624
          %627 = dma.done %s622, 128
        $region40: #{tpu_custom_call.1} parent=35 // pred_fallthru
          _
      $region36: #{tpu_custom_call.1} parent=5 // pred_fallthru
        _
    $region6: #{tpu_custom_call.1} parent=1 // loop_footer
      %s15 = sadd.s32 1, %s11
    $region7: #{tpu_custom_call.1} parent=1 // loop_footer_branch
      %10 = sbr.rel target = $region3
    $region8: #{tpu_custom_call.1} parent=1 // loop_exit
      _
    %628 = vsyncpa [#allocation3], 1
    %s629 = scalar_lea.sflag [#allocation3], 1
    %630 = vsyncpa %s629, 1

</llo_original>
